<compile_context>
chip_gen: v5e
topology: v5e:2x2
jax: 0.10.0
libtpu: 0.0.40
codegen_flags: <defaults>
</compile_context>

<pallas_src>
import jax
import jax.numpy as jnp
from jax.experimental import pallas as pl
from jax.experimental.pallas import tpu as pltpu

PAD_WIDTH = 128       # lane-aligned width of the fused actor-head output
NEG_BIAS = -1e9       # bias of pad columns -> exp() underflows to exactly 0


def _actor_critic_kernel(state_ref,
                         w1_ref, b1_ref,
                         w2_ref, b2_ref,
                         w3_ref, b3_ref,
                         wa_ref, ba_ref,
                         seg_ref,
                         out_ref):
    # fc trunk: Linear(state_dim,256)+ReLU -> Linear(256,128)+ReLU
    #           -> Linear(128,64)+ReLU.
    # ReLU and the bf16 downcast are fused per layer so no standalone f32
    # activation buffer is materialized between matmuls (cuts vst traffic,
    # biggest win on v5e's single vector-store slot).
    x = state_ref[...].astype(jnp.bfloat16)
    h = jnp.maximum(
        jnp.dot(x, w1_ref[...], preferred_element_type=jnp.float32) + b1_ref[...],
        0.0).astype(jnp.bfloat16)
    h = jnp.maximum(
        jnp.dot(h, w2_ref[...], preferred_element_type=jnp.float32) + b2_ref[...],
        0.0).astype(jnp.bfloat16)
    h = jnp.maximum(
        jnp.dot(h, w3_ref[...], preferred_element_type=jnp.float32) + b3_ref[...],
        0.0).astype(jnp.bfloat16)

    # Fused actor heads: one (TB,64) @ (64,128) matmul (7 heads concatenated
    # and zero-padded to 128 lanes; pad columns carry bias NEG_BIAS).
    logits = jnp.dot(h, wa_ref[...], preferred_element_type=jnp.float32) + ba_ref[...]

    # Per-head softmax:
    #   * one global row-max (shift-invariant per head; pad cols -> exp == 0),
    #   * per-head sums broadcast back to every column of that head via a
    #     single bf16 block-diagonal segment matmul on the MXU,
    #   * denominator clamp (robust against a fully-underflowed head),
    #   * EUP approximate reciprocal + one Newton refinement step.
    m = jnp.max(logits, axis=1, keepdims=True)              # XLU reduce
    e = jnp.exp(logits - m)                                  # EUP; f32
    denom = jnp.dot(e.astype(jnp.bfloat16), seg_ref[...],
                    preferred_element_type=jnp.float32)      # per-head sums (MXU, bf16)
    denom = jnp.maximum(denom, 1e-30)                        # no Inf/NaN ever
    r = pl.reciprocal(denom, approx=True)                    # EUP vrcp
    r = r * (2.0 - denom * r)                                # 1 Newton step
    out_ref[...] = (e * r).astype(out_ref.dtype)             # bf16 lane-dense store


def _choose_batch_tile(B, batch_tile):
    TB = min(batch_tile, B)
    # Megacore: v7x has 2 TensorCores; when the whole batch would fit in one
    # tile, split it so the "parallel" grid axis has >= 2 steps to shard.
    if TB >= B and B >= 512:
        TB = ((-(-B // 2)) + 7) // 8 * 8    # ceil(B/2), rounded to sublane multiple
    return TB


def actor_critic_forward_fused(state, params, *, batch_tile=1024):
    """Fused forward: returns the lane-dense (B, 128) bf16 probability slab.

    Columns [off_h, off_h + head_dims[h]) hold the softmax probabilities of
    actor head h; pad columns are exactly 0.  Consumers (sampling / log-prob
    gather) should index this slab directly; `split_heads` exists only for
    PyTorch-API compatibility and costs extra HBM copies.
    """
    B, state_dim = state.shape
    padw = params["wa"].shape[1]
    TB = _choose_batch_tile(B, batch_tile)
    grid = (pl.cdiv(B, TB),)

    # Matmul operands in bf16 (f32 accumulation inside the kernel); biases f32.
    w1 = params["w1"].astype(jnp.bfloat16)
    w2 = params["w2"].astype(jnp.bfloat16)
    w3 = params["w3"].astype(jnp.bfloat16)
    wa = params["wa"].astype(jnp.bfloat16)
    seg = params["seg"].astype(jnp.bfloat16)    # 0/1 -> exact in bf16
    b1, b2, b3, ba = params["b1"], params["b2"], params["b3"], params["ba"]

    def resident(a):
        # Full-array block whose block index never changes -> stays in VMEM.
        # TODO(synk): on v7x, pipeline_mode=pl.Buffered(1) would skip
        # double-buffering these resident weights; omitted since total VMEM at
        # TB<=2048 is only a few MiB.
        return pl.BlockSpec(a.shape, lambda i: (0, 0))

    in_specs = [pl.BlockSpec((TB, state_dim), lambda i: (i, 0)),
                resident(w1), resident(b1),
                resident(w2), resident(b2),
                resident(w3), resident(b3),
                resident(wa), resident(ba),
                resident(seg)]
    out_spec = pl.BlockSpec((TB, padw), lambda i: (i, 0))

    weight_bytes = sum(int(a.size) * a.dtype.itemsize
                       for a in (w1, b1, w2, b2, w3, b3, wa, ba, seg))
    flops = 2 * B * (state_dim * 256 + 256 * 128 + 128 * 64
                     + 64 * padw + padw * padw)
    cost = pl.CostEstimate(
        flops=int(flops),
        transcendentals=int(2 * B * padw),                 # exp + reciprocal
        bytes_accessed=int(state.size * state.dtype.itemsize
                           + B * padw * 2 + weight_bytes))

    return pl.pallas_call(
        _actor_critic_kernel,
        out_shape=jax.ShapeDtypeStruct((B, padw), jnp.bfloat16),
        grid_spec=pltpu.PrefetchScalarGridSpec(
            num_scalar_prefetch=0,
            grid=grid,
            in_specs=in_specs,
            out_specs=out_spec),
        compiler_params=pltpu.CompilerParams(
            dimension_semantics=("parallel",),
            vmem_limit_bytes=32 * 1024 * 1024),
        cost_estimate=cost,
    )(state, w1, b1, w2, b2, w3, b3, wa, ba, seg)


def split_heads(probs, head_dims):
    """PyTorch-compatible 7-tuple view of the fused slab.

    Each slice is a separate XLA copy (narrow, lane-unaligned writes); prefer
    consuming the fused (B, 128) slab directly in sampling / log-prob code.
    """
    outs, off = [], 0
    for d in head_dims:
        outs.append(probs[:, off:off + d])
        off += d
    return tuple(outs)


def actor_critic_forward(state, params, head_dims, *, batch_tile=1024):
    """ActorCritic.forward: tuple of len(head_dims) arrays of shape (B, d)."""
    return split_heads(
        actor_critic_forward_fused(state, params, batch_tile=batch_tile),
        head_dims)


def make_params(key, state_dim, head_dims, pad_width=PAD_WIDTH):
    """PyTorch-like uniform fan-in init; actor heads concatenated + lane-padded."""
    def linear(key, fan_in, fan_out):
        kw, kb = jax.random.split(key)
        bound = 1.0 / jnp.sqrt(jnp.float32(fan_in))
        w = jax.random.uniform(kw, (fan_in, fan_out), jnp.float32, -bound, bound)
        b = jax.random.uniform(kb, (1, fan_out), jnp.float32, -bound, bound)
        return w, b

    total = int(sum(head_dims))
    assert total <= pad_width

    keys = jax.random.split(key, 3 + len(head_dims))
    w1, b1 = linear(keys[0], state_dim, 256)
    w2, b2 = linear(keys[1], 256, 128)
    w3, b3 = linear(keys[2], 128, 64)

    actor_ws, actor_bs = [], []
    for i, d in enumerate(head_dims):
        w, b = linear(keys[3 + i], 64, d)
        actor_ws.append(w)
        actor_bs.append(b)
    wa = jnp.concatenate(actor_ws, axis=1)                       # (64, total)
    ba = jnp.concatenate(actor_bs, axis=1)                       # (1, total)
    wa = jnp.pad(wa, ((0, 0), (0, pad_width - total)))           # zero weights
    ba = jnp.pad(ba, ((0, 0), (0, pad_width - total)),
                 constant_values=NEG_BIAS)                       # exp() -> 0

    # Block-diagonal segment matrix: seg[c1, c2] = 1 iff columns c1, c2 belong
    # to the same actor head.  Pad columns are attached to the last head; their
    # exp() is exactly 0, so they never perturb that head's sum.
    head_id = []
    for h, d in enumerate(head_dims):
        head_id += [h] * d
    head_id += [len(head_dims) - 1] * (pad_width - total)
    hid = jnp.asarray(head_id, jnp.int32)
    seg = (hid[:, None] == hid[None, :]).astype(jnp.float32)     # (pad, pad)

    # TODO(synk): critic Linear(64,1) is only used in evaluate(), not forward().
    return {"w1": w1, "b1": b1, "w2": w2, "b2": b2, "w3": w3, "b3": b3,
            "wa": wa, "ba": ba, "seg": seg}


def _reference_forward(state, params, head_dims):
    """Pure-JAX reference mirroring the kernel's bf16 matmul operands
    (softmax itself in f32)."""
    bf = lambda a: a.astype(jnp.bfloat16)
    h = jnp.maximum(jnp.dot(bf(state), bf(params["w1"]),
                            preferred_element_type=jnp.float32) + params["b1"], 0.0)
    h = jnp.maximum(jnp.dot(bf(h), bf(params["w2"]),
                            preferred_element_type=jnp.float32) + params["b2"], 0.0)
    h = jnp.maximum(jnp.dot(bf(h), bf(params["w3"]),
                            preferred_element_type=jnp.float32) + params["b3"], 0.0)
    logits = jnp.dot(bf(h), bf(params["wa"]),
                     preferred_element_type=jnp.float32) + params["ba"]
    outs, off = [], 0
    for d in head_dims:
        outs.append(jax.nn.softmax(logits[:, off:off + d], axis=1))
        off += d
    return tuple(outs)


if __name__ == "__main__":
    # Small shapes consistent with the module constructor:
    #   state_dim=32; the 7 head sizes are the action-space sizes.
    state_dim = 32
    head_dims = (5, 5, 5, 5, 4, 3, 2)   # fStickLat, fStickLon, fThrottle,
                                        # fRudder, eEleScanLine, eAziScanRange,
                                        # WeaponLaunch
    key = jax.random.PRNGKey(0)
    k_params, k_state, k_state_big = jax.random.split(key, 3)
    params = make_params(k_params, state_dim, head_dims)

    # --- small-batch correctness check (batch=2) ---
    state = jax.random.normal(k_state, (2, state_dim), jnp.float32)
    probs = jax.block_until_ready(actor_critic_forward_fused(state, params))
    outs = split_heads(probs.astype(jnp.float32), head_dims)
    refs = _reference_forward(state, params, head_dims)
    for o, r, d in zip(outs, refs, head_dims):
        assert o.shape == (2, d)
        # bf16 output + bf16 segment-sum denominator => ~3 decimal digits.
        assert jnp.allclose(o, r, atol=5e-3, rtol=2e-2)
        assert jnp.allclose(jnp.sum(o, axis=1), 1.0, atol=1e-2)

    # --- larger batch: exercises the multi-step "parallel" grid (megacore) ---
    B = 4096
    state_big = jax.random.normal(k_state_big, (B, state_dim), jnp.float32)
    probs_big = jax.block_until_ready(
        actor_critic_forward_fused(state_big, params, batch_tile=1024))
    assert probs_big.shape == (B, PAD_WIDTH)
    assert bool(jnp.all(jnp.isfinite(probs_big.astype(jnp.float32))))
    off = 0
    for d in head_dims:
        s = jnp.sum(probs_big[:, off:off + d].astype(jnp.float32), axis=1)
        assert jnp.allclose(s, 1.0, atol=1e-2)
        off += d

    print("KERNEL_OK")
</pallas_src>

<mosaic_0001>
module attributes {stable_mosaic.version = 11 : i64} {
  func.func @_actor_critic_kernel(%arg0: i32, %arg1: memref<2x32xf32, #tpu.memory_space<vmem>>, %arg2: memref<32x256xbf16, #tpu.memory_space<vmem>>, %arg3: memref<1x256xf32, #tpu.memory_space<vmem>>, %arg4: memref<256x128xbf16, #tpu.memory_space<vmem>>, %arg5: memref<1x128xf32, #tpu.memory_space<vmem>>, %arg6: memref<128x64xbf16, #tpu.memory_space<vmem>>, %arg7: memref<1x64xf32, #tpu.memory_space<vmem>>, %arg8: memref<64x128xbf16, #tpu.memory_space<vmem>>, %arg9: memref<1x128xf32, #tpu.memory_space<vmem>>, %arg10: memref<128x128xbf16, #tpu.memory_space<vmem>>, %arg11: memref<2x128xbf16, #tpu.memory_space<vmem>>) attributes {dimension_semantics = [#tpu.dimension_semantics<parallel>], iteration_bounds = array<i64: 1>, scalar_prefetch = 0 : i64, scratch_operands = 0 : i64, tpu.core_type = #tpu.core_type<tc>, window_params = [{transform_indices = @transform_0, window_bounds = array<i64: 2, 32>}, {pipeline_mode = #tpu.pipeline_mode<synchronous>, transform_indices = @transform_1, window_bounds = array<i64: 32, 256>}, {pipeline_mode = #tpu.pipeline_mode<synchronous>, transform_indices = @transform_2, window_bounds = array<i64: 1, 256>}, {pipeline_mode = #tpu.pipeline_mode<synchronous>, transform_indices = @transform_3, window_bounds = array<i64: 256, 128>}, {pipeline_mode = #tpu.pipeline_mode<synchronous>, transform_indices = @transform_4, window_bounds = array<i64: 1, 128>}, {pipeline_mode = #tpu.pipeline_mode<synchronous>, transform_indices = @transform_5, window_bounds = array<i64: 128, 64>}, {pipeline_mode = #tpu.pipeline_mode<synchronous>, transform_indices = @transform_6, window_bounds = array<i64: 1, 64>}, {pipeline_mode = #tpu.pipeline_mode<synchronous>, transform_indices = @transform_7, window_bounds = array<i64: 64, 128>}, {pipeline_mode = #tpu.pipeline_mode<synchronous>, transform_indices = @transform_8, window_bounds = array<i64: 1, 128>}, {pipeline_mode = #tpu.pipeline_mode<synchronous>, transform_indices = @transform_9, window_bounds = array<i64: 128, 128>}, {transform_indices = @transform_10, window_bounds = array<i64: 2, 128>}]} {
    %c0 = arith.constant 0 : index
    %c0_0 = arith.constant 0 : index
    %0 = vector.load %arg1[%c0, %c0_0] : memref<2x32xf32, #tpu.memory_space<vmem>>, vector<2x32xf32>
    %1 = arith.truncf %0 : vector<2x32xf32> to vector<2x32xbf16>
    %c0_1 = arith.constant 0 : index
    %c0_2 = arith.constant 0 : index
    %2 = vector.load %arg2[%c0_1, %c0_2] : memref<32x256xbf16, #tpu.memory_space<vmem>>, vector<32x256xbf16>
    %cst = arith.constant dense<0.000000e+00> : vector<2x256xf32>
    %3 = tpu.matmul %1, %2, %cst {dimension_numbers = #tpu.dot_dimension_numbers<[1], [0], [0], [1], [0, 0, 1, 1], [], []>} : vector<2x32xbf16>, vector<32x256xbf16>, vector<2x256xf32> -> vector<2x256xf32>
    %c0_3 = arith.constant 0 : index
    %c0_4 = arith.constant 0 : index
    %4 = vector.load %arg3[%c0_3, %c0_4] : memref<1x256xf32, #tpu.memory_space<vmem>>, vector<1x256xf32>
    %5 = vector.broadcast %4 : vector<1x256xf32> to vector<2x256xf32>
    %6 = arith.addf %3, %5 : vector<2x256xf32>
    %cst_5 = arith.constant 0.000000e+00 : f32
    %7 = vector.broadcast %cst_5 : f32 to vector<2x256xf32>
    %8 = arith.maximumf %6, %7 : vector<2x256xf32>
    %9 = arith.truncf %8 : vector<2x256xf32> to vector<2x256xbf16>
    %c0_6 = arith.constant 0 : index
    %c0_7 = arith.constant 0 : index
    %10 = vector.load %arg4[%c0_6, %c0_7] : memref<256x128xbf16, #tpu.memory_space<vmem>>, vector<256x128xbf16>
    %cst_8 = arith.constant dense<0.000000e+00> : vector<2x128xf32>
    %11 = tpu.matmul %9, %10, %cst_8 {dimension_numbers = #tpu.dot_dimension_numbers<[1], [0], [0], [1], [0, 0, 1, 1], [], []>} : vector<2x256xbf16>, vector<256x128xbf16>, vector<2x128xf32> -> vector<2x128xf32>
    %c0_9 = arith.constant 0 : index
    %c0_10 = arith.constant 0 : index
    %12 = vector.load %arg5[%c0_9, %c0_10] : memref<1x128xf32, #tpu.memory_space<vmem>>, vector<1x128xf32>
    %13 = vector.broadcast %12 : vector<1x128xf32> to vector<2x128xf32>
    %14 = arith.addf %11, %13 : vector<2x128xf32>
    %cst_11 = arith.constant 0.000000e+00 : f32
    %15 = vector.broadcast %cst_11 : f32 to vector<2x128xf32>
    %16 = arith.maximumf %14, %15 : vector<2x128xf32>
    %17 = arith.truncf %16 : vector<2x128xf32> to vector<2x128xbf16>
    %c0_12 = arith.constant 0 : index
    %c0_13 = arith.constant 0 : index
    %18 = vector.load %arg6[%c0_12, %c0_13] : memref<128x64xbf16, #tpu.memory_space<vmem>>, vector<128x64xbf16>
    %cst_14 = arith.constant dense<0.000000e+00> : vector<2x64xf32>
    %19 = tpu.matmul %17, %18, %cst_14 {dimension_numbers = #tpu.dot_dimension_numbers<[1], [0], [0], [1], [0, 0, 1, 1], [], []>} : vector<2x128xbf16>, vector<128x64xbf16>, vector<2x64xf32> -> vector<2x64xf32>
    %c0_15 = arith.constant 0 : index
    %c0_16 = arith.constant 0 : index
    %20 = vector.load %arg7[%c0_15, %c0_16] : memref<1x64xf32, #tpu.memory_space<vmem>>, vector<1x64xf32>
    %21 = vector.broadcast %20 : vector<1x64xf32> to vector<2x64xf32>
    %22 = arith.addf %19, %21 : vector<2x64xf32>
    %cst_17 = arith.constant 0.000000e+00 : f32
    %23 = vector.broadcast %cst_17 : f32 to vector<2x64xf32>
    %24 = arith.maximumf %22, %23 : vector<2x64xf32>
    %25 = arith.truncf %24 : vector<2x64xf32> to vector<2x64xbf16>
    %c0_18 = arith.constant 0 : index
    %c0_19 = arith.constant 0 : index
    %26 = vector.load %arg8[%c0_18, %c0_19] : memref<64x128xbf16, #tpu.memory_space<vmem>>, vector<64x128xbf16>
    %cst_20 = arith.constant dense<0.000000e+00> : vector<2x128xf32>
    %27 = tpu.matmul %25, %26, %cst_20 {dimension_numbers = #tpu.dot_dimension_numbers<[1], [0], [0], [1], [0, 0, 1, 1], [], []>} : vector<2x64xbf16>, vector<64x128xbf16>, vector<2x128xf32> -> vector<2x128xf32>
    %c0_21 = arith.constant 0 : index
    %c0_22 = arith.constant 0 : index
    %28 = vector.load %arg9[%c0_21, %c0_22] : memref<1x128xf32, #tpu.memory_space<vmem>>, vector<1x128xf32>
    %29 = vector.broadcast %28 : vector<1x128xf32> to vector<2x128xf32>
    %30 = arith.addf %27, %29 : vector<2x128xf32>
    %cst_23 = arith.constant dense<0xFF800000> : vector<2xf32>
    %31 = vector.multi_reduction <maximumf>, %30, %cst_23 [1] : vector<2x128xf32> to vector<2xf32>
    %32 = vector.shape_cast %31 : vector<2xf32> to vector<2x1xf32>
    %33 = vector.broadcast %32 : vector<2x1xf32> to vector<2x128xf32>
    %34 = arith.subf %30, %33 : vector<2x128xf32>
    %35 = math.exp %34 : vector<2x128xf32>
    %36 = arith.truncf %35 : vector<2x128xf32> to vector<2x128xbf16>
    %c0_24 = arith.constant 0 : index
    %c0_25 = arith.constant 0 : index
    %37 = vector.load %arg10[%c0_24, %c0_25] : memref<128x128xbf16, #tpu.memory_space<vmem>>, vector<128x128xbf16>
    %cst_26 = arith.constant dense<0.000000e+00> : vector<2x128xf32>
    %38 = tpu.matmul %36, %37, %cst_26 {dimension_numbers = #tpu.dot_dimension_numbers<[1], [0], [0], [1], [0, 0, 1, 1], [], []>} : vector<2x128xbf16>, vector<128x128xbf16>, vector<2x128xf32> -> vector<2x128xf32>
    %cst_27 = arith.constant 1.000000e-30 : f32
    %39 = vector.broadcast %cst_27 : f32 to vector<2x128xf32>
    %40 = arith.maximumf %38, %39 : vector<2x128xf32>
    %41 = tpu.reciprocal %40 {approx = true} : vector<2x128xf32> -> vector<2x128xf32>
    %42 = arith.mulf %40, %41 : vector<2x128xf32>
    %cst_28 = arith.constant 2.000000e+00 : f32
    %43 = vector.broadcast %cst_28 : f32 to vector<2x128xf32>
    %44 = arith.subf %43, %42 : vector<2x128xf32>
    %45 = arith.mulf %41, %44 : vector<2x128xf32>
    %46 = arith.mulf %35, %45 : vector<2x128xf32>
    %47 = arith.truncf %46 : vector<2x128xf32> to vector<2x128xbf16>
    %c0_29 = arith.constant 0 : index
    %c0_30 = arith.constant 0 : index
    %48 = vector.load %arg11[%c0_29, %c0_30] : memref<2x128xbf16, #tpu.memory_space<vmem>>, vector<2x128xbf16>
    tpu.vector_store %arg11[%c0_29, %c0_30], %47 {strides = array<i32>} : memref<2x128xbf16, #tpu.memory_space<vmem>>, vector<2x128xbf16>,
    return
  }
  func.func @transform_0(%arg0: i32) -> (i32, i32) {
    %c0_i32 = arith.constant 0 : i32
    %c0_i32_0 = arith.constant 0 : i32
    return %arg0, %c0_i32 : i32, i32
  }
  func.func @transform_1(%arg0: i32) -> (i32, i32) {
    %c0_i32 = arith.constant 0 : i32
    %c0_i32_0 = arith.constant 0 : i32
    %c0_i32_1 = arith.constant 0 : i32
    return %c0_i32, %c0_i32_0 : i32, i32
  }
  func.func @transform_2(%arg0: i32) -> (i32, i32) {
    %c0_i32 = arith.constant 0 : i32
    %c0_i32_0 = arith.constant 0 : i32
    %c0_i32_1 = arith.constant 0 : i32
    return %c0_i32, %c0_i32_0 : i32, i32
  }
  func.func @transform_3(%arg0: i32) -> (i32, i32) {
    %c0_i32 = arith.constant 0 : i32
    %c0_i32_0 = arith.constant 0 : i32
    %c0_i32_1 = arith.constant 0 : i32
    return %c0_i32, %c0_i32_0 : i32, i32
  }
  func.func @transform_4(%arg0: i32) -> (i32, i32) {
    %c0_i32 = arith.constant 0 : i32
    %c0_i32_0 = arith.constant 0 : i32
    %c0_i32_1 = arith.constant 0 : i32
    return %c0_i32, %c0_i32_0 : i32, i32
  }
  func.func @transform_5(%arg0: i32) -> (i32, i32) {
    %c0_i32 = arith.constant 0 : i32
    %c0_i32_0 = arith.constant 0 : i32
    %c0_i32_1 = arith.constant 0 : i32
    return %c0_i32, %c0_i32_0 : i32, i32
  }
  func.func @transform_6(%arg0: i32) -> (i32, i32) {
    %c0_i32 = arith.constant 0 : i32
    %c0_i32_0 = arith.constant 0 : i32
    %c0_i32_1 = arith.constant 0 : i32
    return %c0_i32, %c0_i32_0 : i32, i32
  }
  func.func @transform_7(%arg0: i32) -> (i32, i32) {
    %c0_i32 = arith.constant 0 : i32
    %c0_i32_0 = arith.constant 0 : i32
    %c0_i32_1 = arith.constant 0 : i32
    return %c0_i32, %c0_i32_0 : i32, i32
  }
  func.func @transform_8(%arg0: i32) -> (i32, i32) {
    %c0_i32 = arith.constant 0 : i32
    %c0_i32_0 = arith.constant 0 : i32
    %c0_i32_1 = arith.constant 0 : i32
    return %c0_i32, %c0_i32_0 : i32, i32
  }
  func.func @transform_9(%arg0: i32) -> (i32, i32) {
    %c0_i32 = arith.constant 0 : i32
    %c0_i32_0 = arith.constant 0 : i32
    %c0_i32_1 = arith.constant 0 : i32
    return %c0_i32, %c0_i32_0 : i32, i32
  }
  func.func @transform_10(%arg0: i32) -> (i32, i32) {
    %c0_i32 = arith.constant 0 : i32
    %c0_i32_0 = arith.constant 0 : i32
    return %arg0, %c0_i32 : i32, i32
  }
}

</mosaic_0001>

<llo_original>
// kernel: tpu_custom_call.1
$region0: #{tpu_custom_call.1}
  #allocation0 [shape = 'u32[]', space=smem, size = 0x4, offset = 0x4, fixed_abs, tag = 'smem constant byte address 0x4 - core index']
  #allocation1 [shape = 'u32[72,128]{1,0:T(1,128)}', space=vmem, size = 0x9000, scoped, tag = 'internal scratch']
  %s0 = inlined_call_operand.vmem [shape: f32[2,32], index: 0, kind: input, shape index: {}]
  %s1 = inlined_call_operand.vmem [shape: bf16[32,256], index: 1, kind: input, shape index: {}]
  %s2 = inlined_call_operand.vmem [shape: f32[1,256], index: 2, kind: input, shape index: {}]
  %s3 = inlined_call_operand.hbm [shape: bf16[256,128], index: 3, kind: input, shape index: {}]
  %s4 = inlined_call_operand.vmem [shape: f32[1,128], index: 4, kind: input, shape index: {}]
  %s5 = inlined_call_operand.vmem [shape: bf16[128,64], index: 5, kind: input, shape index: {}]
  %s6 = inlined_call_operand.vmem [shape: f32[1,64], index: 6, kind: input, shape index: {}]
  %s7 = inlined_call_operand.hbm [shape: bf16[64,128], index: 7, kind: input, shape index: {}]
  %s8 = inlined_call_operand.vmem [shape: f32[1,128], index: 8, kind: input, shape index: {}]
  %s9 = inlined_call_operand.vmem [shape: bf16[128,128], index: 9, kind: input, shape index: {}]
  %s10 = inlined_call_operand.hbm [shape: bf16[2,128], index: 10, kind: output, shape index: {}]
  %s11 = sld [smem:[#allocation0]]
  $region58: #{tpu_custom_call.1} parent=0
    _
  %s13 = ssub.s32 1, %s11
  %s14 = scalar_select 0, %s13, %s11
  $region1: #{tpu_custom_call.1} parent=0
    #allocation2 [shape = 'u8[65536]{0}', space=vmem, size = 0x10000, scoped, tag = 'input window, operand 3, single buffered']
    #allocation3 [shape = 's32[1]{0}', space=sflag, size = 0x4, scoped, tag = 'scoped memory for tpu_custom_call.1']
    #allocation4 [shape = 's32[1]{0}', space=sflag, size = 0x4, scoped, tag = 'scoped memory for tpu_custom_call.1']
    #allocation5 [shape = 'u8[16384]{0}', space=vmem, size = 0x4000, scoped, tag = 'input window, operand 7, single buffered']
    #allocation6 [shape = 's32[1]{0}', space=sflag, size = 0x4, scoped, tag = 'scoped memory for tpu_custom_call.1']
    #allocation7 [shape = 'u8[512]{0}', space=vmem, size = 0x400, scoped, tag = 'output window, operand 0, single buffered']
    %15 = vsyncpa [#allocation3], 0
    %16 = vsyncpa [#allocation6], 0
    %17 = vsyncpa [#allocation4], 0
    // Predicated region
    $region2: #{tpu_custom_call.1} parent=1 // pred_check
      _
    $region3: #{tpu_custom_call.1} parent=1 // pred_check_branch
      %19 = sbr.rel (0) target = $region5
    $region4: #{tpu_custom_call.1} parent=1 // pred_region
      _
    $region5: #{tpu_custom_call.1} parent=1 // pred_fallthru
      _
    // Predicated region
    $region6: #{tpu_custom_call.1} parent=1 // pred_check
      _
    $region7: #{tpu_custom_call.1} parent=1 // pred_check_branch
      %21 = sbr.rel (0) target = $region9
    $region8: #{tpu_custom_call.1} parent=1 // pred_region
      _
    $region9: #{tpu_custom_call.1} parent=1 // pred_fallthru
      _
    // Predicated region
    $region10: #{tpu_custom_call.1} parent=1 // pred_check
      _
    $region11: #{tpu_custom_call.1} parent=1 // pred_check_branch
      %23 = sbr.rel (0) target = $region13
    $region12: #{tpu_custom_call.1} parent=1 // pred_region
      _
    $region13: #{tpu_custom_call.1} parent=1 // pred_fallthru
      _
    // Predicated region
    $region14: #{tpu_custom_call.1} parent=1 // pred_check
      _
    $region15: #{tpu_custom_call.1} parent=1 // pred_check_branch
      %25 = sbr.rel (0) target = $region17
    $region16: #{tpu_custom_call.1} parent=1 // pred_region
      %27 = vsyncadd [#allocation3], 0
      %s28 = sshll.u32 %s3, 4
      %s29 = int_to_ptr.hbm [resolvable:$true] %s28
      %s30 = sshll.u32 [#allocation2], 4
      %s31 = int_to_ptr.vmem [resolvable:$true] %s30
      %36 = dma.hbm_to_vmem [thread:$0]  %s29, 2048, %s31, [#allocation3], 64, 64, 4
    $region17: #{tpu_custom_call.1} parent=1 // pred_fallthru
      _
    // Predicated region
    $region18: #{tpu_custom_call.1} parent=1 // pred_check
      _
    $region19: #{tpu_custom_call.1} parent=1 // pred_check_branch
      %38 = sbr.rel (0) target = $region21
    $region20: #{tpu_custom_call.1} parent=1 // pred_region
      _
    $region21: #{tpu_custom_call.1} parent=1 // pred_fallthru
      _
    // Predicated region
    $region22: #{tpu_custom_call.1} parent=1 // pred_check
      _
    $region23: #{tpu_custom_call.1} parent=1 // pred_check_branch
      %40 = sbr.rel (0) target = $region25
    $region24: #{tpu_custom_call.1} parent=1 // pred_region
      _
    $region25: #{tpu_custom_call.1} parent=1 // pred_fallthru
      _
    // Predicated region
    $region26: #{tpu_custom_call.1} parent=1 // pred_check
      _
    $region27: #{tpu_custom_call.1} parent=1 // pred_check_branch
      %42 = sbr.rel (0) target = $region29
    $region28: #{tpu_custom_call.1} parent=1 // pred_region
      _
    $region29: #{tpu_custom_call.1} parent=1 // pred_fallthru
      _
    // Predicated region
    $region30: #{tpu_custom_call.1} parent=1 // pred_check
      _
    $region31: #{tpu_custom_call.1} parent=1 // pred_check_branch
      %44 = sbr.rel (0) target = $region33
    $region32: #{tpu_custom_call.1} parent=1 // pred_region
      %46 = vsyncadd [#allocation6], 0
      %s47 = sshll.u32 %s7, 4
      %s48 = int_to_ptr.hbm [resolvable:$true] %s47
      %s49 = sshll.u32 [#allocation5], 4
      %s50 = int_to_ptr.vmem [resolvable:$true] %s49
      %55 = dma.hbm_to_vmem [thread:$0]  %s48, 512, %s50, [#allocation6], 64, 64, 4
    $region33: #{tpu_custom_call.1} parent=1 // pred_fallthru
      _
    // Predicated region
    $region34: #{tpu_custom_call.1} parent=1 // pred_check
      _
    $region35: #{tpu_custom_call.1} parent=1 // pred_check_branch
      %57 = sbr.rel (0) target = $region37
    $region36: #{tpu_custom_call.1} parent=1 // pred_region
      _
    $region37: #{tpu_custom_call.1} parent=1 // pred_fallthru
      _
    // Predicated region
    $region38: #{tpu_custom_call.1} parent=1 // pred_check
      _
    $region39: #{tpu_custom_call.1} parent=1 // pred_check_branch
      %59 = sbr.rel (0) target = $region41
    $region40: #{tpu_custom_call.1} parent=1 // pred_region
      _
    $region41: #{tpu_custom_call.1} parent=1 // pred_fallthru
      _
    // Predicated region
    $region42: #{tpu_custom_call.1} parent=1 // pred_check
      _
    $region43: #{tpu_custom_call.1} parent=1 // pred_check_branch
      %61 = sbr.rel (0) target = $region45
    $region44: #{tpu_custom_call.1} parent=1 // pred_region
      %63 = dma.done [#allocation3], 2048
    $region45: #{tpu_custom_call.1} parent=1 // pred_fallthru
      _
    // Predicated region
    $region46: #{tpu_custom_call.1} parent=1 // pred_check
      _
    $region47: #{tpu_custom_call.1} parent=1 // pred_check_branch
      %65 = sbr.rel (0) target = $region49
    $region48: #{tpu_custom_call.1} parent=1 // pred_region
      %67 = dma.done [#allocation6], 512
    $region49: #{tpu_custom_call.1} parent=1 // pred_fallthru
      _
    %v69 = vld [vmem:[%s0] sm:$0x3]
    %v70 = vpack.c.bf16 %v69, %v69
    %v71 = vld [vmem:[%s1] sm:$0xff]
    %v72 = vld [vmem:[%s1 + $0x8] sm:$0xff]
    %v73 = vld [vmem:[%s1 + $0x10] sm:$0xff]
    %v74 = vld [vmem:[%s1 + $0x18] sm:$0xff]
    %v75 = vld [vmem:[%s2] sm:$0x3]
    %v77 = vperm.slane %v75, 0
    %v78 = vperm.slane %v75, 1
    %v85 = vunpack.c.l.b16 %v71
    %v86 = vunpack.c.h.b16 %v71
    %v87 = vunpack.c.l.b16 %v72
    %v88 = vunpack.c.h.b16 %v72
    %v89 = vunpack.c.l.b16 %v73
    %v90 = vunpack.c.h.b16 %v73
    %v91 = vunpack.c.l.b16 %v74
    %v92 = vunpack.c.h.b16 %v74
    %v93 = vpack.c.b16 %v87, %v85
    %v94 = vpack.c.b16 %v88, %v86
    %v95 = vpack.c.b16 %v91, %v89
    %v96 = vpack.c.b16 %v92, %v90
    %vm101 = vcmask 261120
    %v103 = vsel %vm101, %v70, 0
    %105 = vmatpush.bf16.msra.mxu0 0
    %106 = vmatpush.bf16.msra.mxu0 0
    %107 = vmatpush.bf16.msra.mxu0 0
    %108 = vmatpush.bf16.msra.mxu0 0
    %109 = vmatpush.bf16.msra.mxu0 0
    %110 = vmatpush.bf16.msra.mxu0 0
    %111 = vmatpush.bf16.msra.mxu0 %v95
    %112 = vmatpush.bf16.msra.mxu0 %v93
    %113 = vmatmul.bf16.gmra.mxu0 %v103
    %v114 = vpop.f32.mrf.mxu0
    %v115 = vadd.f32 %v77, %v114
    %v116 = vpop.f32.mrf.mxu0
    %117 = vdwg.mxu0
    %118 = vmatpush.bf16.msra.mxu0 0
    %119 = vmatpush.bf16.msra.mxu0 0
    %120 = vmatpush.bf16.msra.mxu0 0
    %121 = vmatpush.bf16.msra.mxu0 0
    %122 = vmatpush.bf16.msra.mxu0 0
    %123 = vmatpush.bf16.msra.mxu0 0
    %124 = vmatpush.bf16.msra.mxu0 %v96
    %125 = vmatpush.bf16.msra.mxu0 %v94
    %126 = vmatmul.bf16.gmra.mxu0 %v103
    %v127 = vpop.f32.mrf.mxu0
    %v128 = vadd.f32 %v78, %v127
    %v129 = vpop.f32.mrf.mxu0
    %130 = vdwg.mxu0
    %v131 = vmax.f32 %v115, 0.0
    %v132 = vmax.f32 %v128, 0.0
    %v133 = vpack.c.bf16 %v131, %v131
    %v134 = vpack.c.bf16 %v132, %v132
    %v135 = vld [vmem:[#allocation2] sm:$0xf]
    %v136 = vld [vmem:[#allocation2 + $0x4] sm:$0xf]
    %v137 = vld [vmem:[#allocation2 + $0x8] sm:$0xf]
    %v138 = vld [vmem:[#allocation2 + $0xc] sm:$0xf]
    %v139 = vld [vmem:[#allocation2 + $0x10] sm:$0xf]
    %v140 = vld [vmem:[#allocation2 + $0x14] sm:$0xf]
    %v141 = vld [vmem:[#allocation2 + $0x18] sm:$0xf]
    %v142 = vld [vmem:[#allocation2 + $0x1c] sm:$0xf]
    %v143 = vld [vmem:[#allocation2 + $0x20] sm:$0xf]
    %v144 = vld [vmem:[#allocation2 + $0x24] sm:$0xf]
    %v145 = vld [vmem:[#allocation2 + $0x28] sm:$0xf]
    %v146 = vld [vmem:[#allocation2 + $0x2c] sm:$0xf]
    %v147 = vld [vmem:[#allocation2 + $0x30] sm:$0xf]
    %v148 = vld [vmem:[#allocation2 + $0x34] sm:$0xf]
    %v149 = vld [vmem:[#allocation2 + $0x38] sm:$0xf]
    %v150 = vld [vmem:[#allocation2 + $0x3c] sm:$0xf]
    %v151 = vld [vmem:[#allocation2 + $0x40] sm:$0xf]
    %v152 = vld [vmem:[#allocation2 + $0x44] sm:$0xf]
    %v153 = vld [vmem:[#allocation2 + $0x48] sm:$0xf]
    %v154 = vld [vmem:[#allocation2 + $0x4c] sm:$0xf]
    %v155 = vld [vmem:[#allocation2 + $0x50] sm:$0xf]
    %v156 = vld [vmem:[#allocation2 + $0x54] sm:$0xf]
    %v157 = vld [vmem:[#allocation2 + $0x58] sm:$0xf]
    %v158 = vld [vmem:[#allocation2 + $0x5c] sm:$0xf]
    %v159 = vld [vmem:[#allocation2 + $0x60] sm:$0xf]
    %v160 = vld [vmem:[#allocation2 + $0x64] sm:$0xf]
    %v161 = vld [vmem:[#allocation2 + $0x68] sm:$0xf]
    %v162 = vld [vmem:[#allocation2 + $0x6c] sm:$0xf]
    %v163 = vld [vmem:[#allocation2 + $0x70] sm:$0xf]
    %v164 = vld [vmem:[#allocation2 + $0x74] sm:$0xf]
    %v165 = vld [vmem:[#allocation2 + $0x78] sm:$0xf]
    %v166 = vld [vmem:[#allocation2 + $0x7c] sm:$0xf]
    %v167 = vld [vmem:[%s4] sm:$0x1]
    %v169 = vperm.slane %v167, 0
    %v203 = vunpack.c.l.b16 %v135
    %v204 = vunpack.c.l.b16 %v136
    %v205 = vunpack.c.l.b16 %v137
    %v206 = vunpack.c.l.b16 %v138
    %v207 = vunpack.c.l.b16 %v139
    %v208 = vunpack.c.l.b16 %v140
    %v209 = vunpack.c.l.b16 %v141
    %v210 = vunpack.c.l.b16 %v142
    %v211 = vunpack.c.l.b16 %v143
    %v212 = vunpack.c.l.b16 %v144
    %v213 = vunpack.c.l.b16 %v145
    %v214 = vunpack.c.l.b16 %v146
    %v215 = vunpack.c.l.b16 %v147
    %v216 = vunpack.c.l.b16 %v148
    %v217 = vunpack.c.l.b16 %v149
    %v218 = vunpack.c.l.b16 %v150
    %v219 = vunpack.c.l.b16 %v151
    %v220 = vunpack.c.l.b16 %v152
    %v221 = vunpack.c.l.b16 %v153
    %v222 = vunpack.c.l.b16 %v154
    %v223 = vunpack.c.l.b16 %v155
    %v224 = vunpack.c.l.b16 %v156
    %v225 = vunpack.c.l.b16 %v157
    %v226 = vunpack.c.l.b16 %v158
    %v227 = vunpack.c.l.b16 %v159
    %v228 = vunpack.c.l.b16 %v160
    %v229 = vunpack.c.l.b16 %v161
    %v230 = vunpack.c.l.b16 %v162
    %v231 = vunpack.c.l.b16 %v163
    %v232 = vunpack.c.l.b16 %v164
    %v233 = vunpack.c.l.b16 %v165
    %v234 = vunpack.c.l.b16 %v166
    %v235 = vpack.c.b16 %v204, %v203
    %v236 = vpack.c.b16 %v206, %v205
    %v237 = vpack.c.b16 %v208, %v207
    %v238 = vpack.c.b16 %v210, %v209
    %v239 = vpack.c.b16 %v212, %v211
    %v240 = vpack.c.b16 %v214, %v213
    %v241 = vpack.c.b16 %v216, %v215
    %v242 = vpack.c.b16 %v218, %v217
    %v243 = vpack.c.b16 %v220, %v219
    %v244 = vpack.c.b16 %v222, %v221
    %v245 = vpack.c.b16 %v224, %v223
    %v246 = vpack.c.b16 %v226, %v225
    %v247 = vpack.c.b16 %v228, %v227
    %v248 = vpack.c.b16 %v230, %v229
    %v249 = vpack.c.b16 %v232, %v231
    %v250 = vpack.c.b16 %v234, %v233
    %267 = vmatpush.bf16.msra.mxu0 %v242
    %268 = vmatpush.bf16.msra.mxu0 %v241
    %269 = vmatpush.bf16.msra.mxu0 %v240
    %270 = vmatpush.bf16.msra.mxu0 %v239
    %271 = vmatpush.bf16.msra.mxu0 %v238
    %272 = vmatpush.bf16.msra.mxu0 %v237
    %273 = vmatpush.bf16.msra.mxu0 %v236
    %274 = vmatpush.bf16.msra.mxu0 %v235
    %275 = vmatmul.bf16.gmra.mxu0 %v133
    %v276 = vpop.f32.mrf.mxu0
    %v277 = vadd.f32 %v169, %v276
    %v278 = vpop.f32.mrf.mxu0
    %279 = vdwg.mxu0
    %280 = vmatpush.bf16.msra.mxu0 %v250
    %281 = vmatpush.bf16.msra.mxu0 %v249
    %282 = vmatpush.bf16.msra.mxu0 %v248
    %283 = vmatpush.bf16.msra.mxu0 %v247
    %284 = vmatpush.bf16.msra.mxu0 %v246
    %285 = vmatpush.bf16.msra.mxu0 %v245
    %286 = vmatpush.bf16.msra.mxu0 %v244
    %287 = vmatpush.bf16.msra.mxu0 %v243
    %288 = vmatmul.bf16.gmra.mxu0 %v134
    %v289 = vpop.f32.mrf.mxu0
    %v290 = vadd.f32 %v277, %v289
    %v291 = vpop.f32.mrf.mxu0
    %292 = vdwg.mxu0
    %v293 = vmax.f32 %v290, 0.0
    %v294 = vpack.c.bf16 %v293, %v293
    %v295 = vld [vmem:[%s5] sm:$0xf]
    %v296 = vld [vmem:[%s5 + $0x4] sm:$0xf]
    %v297 = vld [vmem:[%s5 + $0x8] sm:$0xf]
    %v298 = vld [vmem:[%s5 + $0xc] sm:$0xf]
    %v299 = vld [vmem:[%s5 + $0x10] sm:$0xf]
    %v300 = vld [vmem:[%s5 + $0x14] sm:$0xf]
    %v301 = vld [vmem:[%s5 + $0x18] sm:$0xf]
    %v302 = vld [vmem:[%s5 + $0x1c] sm:$0xf]
    %v303 = vld [vmem:[%s5 + $0x20] sm:$0xf]
    %v304 = vld [vmem:[%s5 + $0x24] sm:$0xf]
    %v305 = vld [vmem:[%s5 + $0x28] sm:$0xf]
    %v306 = vld [vmem:[%s5 + $0x2c] sm:$0xf]
    %v307 = vld [vmem:[%s5 + $0x30] sm:$0xf]
    %v308 = vld [vmem:[%s5 + $0x34] sm:$0xf]
    %v309 = vld [vmem:[%s5 + $0x38] sm:$0xf]
    %v310 = vld [vmem:[%s5 + $0x3c] sm:$0xf]
    %v311 = vld [vmem:[%s6] sm:$0x1]
    %v313 = vperm.slane %v311, 0
    %v331 = vunpack.c.l.b16 %v295
    %v332 = vunpack.c.l.b16 %v296
    %v333 = vunpack.c.l.b16 %v297
    %v334 = vunpack.c.l.b16 %v298
    %v335 = vunpack.c.l.b16 %v299
    %v336 = vunpack.c.l.b16 %v300
    %v337 = vunpack.c.l.b16 %v301
    %v338 = vunpack.c.l.b16 %v302
    %v339 = vunpack.c.l.b16 %v303
    %v340 = vunpack.c.l.b16 %v304
    %v341 = vunpack.c.l.b16 %v305
    %v342 = vunpack.c.l.b16 %v306
    %v343 = vunpack.c.l.b16 %v307
    %v344 = vunpack.c.l.b16 %v308
    %v345 = vunpack.c.l.b16 %v309
    %v346 = vunpack.c.l.b16 %v310
    %v347 = vpack.c.b16 %v332, %v331
    %v348 = vpack.c.b16 %v334, %v333
    %v349 = vpack.c.b16 %v336, %v335
    %v350 = vpack.c.b16 %v338, %v337
    %v351 = vpack.c.b16 %v340, %v339
    %v352 = vpack.c.b16 %v342, %v341
    %v353 = vpack.c.b16 %v344, %v343
    %v354 = vpack.c.b16 %v346, %v345
    %363 = vmatpush.bf16.msra.mxu0 %v354
    %364 = vmatpush.bf16.msra.mxu0 %v353
    %365 = vmatpush.bf16.msra.mxu0 %v352
    %366 = vmatpush.bf16.msra.mxu0 %v351
    %367 = vmatpush.bf16.msra.mxu0 %v350
    %368 = vmatpush.bf16.msra.mxu0 %v349
    %369 = vmatpush.bf16.msra.mxu0 %v348
    %370 = vmatpush.bf16.msra.mxu0 %v347
    %371 = vmatmul.bf16.gmra.mxu0 %v294
    %v372 = vpop.f32.mrf.mxu0
    %v373 = vadd.f32 %v313, %v372
    %v374 = vpop.f32.mrf.mxu0
    %375 = vdwg.mxu0
    %v376 = vmax.f32 %v373, 0.0
    %v377 = vpack.c.bf16 %v376, %v376
    %v378 = vld [vmem:[#allocation5] sm:$0xf]
    %v379 = vld [vmem:[#allocation5 + $0x4] sm:$0xf]
    %v380 = vld [vmem:[#allocation5 + $0x8] sm:$0xf]
    %v381 = vld [vmem:[#allocation5 + $0xc] sm:$0xf]
    %v382 = vld [vmem:[#allocation5 + $0x10] sm:$0xf]
    %v383 = vld [vmem:[#allocation5 + $0x14] sm:$0xf]
    %v384 = vld [vmem:[#allocation5 + $0x18] sm:$0xf]
    %v385 = vld [vmem:[#allocation5 + $0x1c] sm:$0xf]
    %v386 = vld [vmem:[%s8] sm:$0x1]
    %v388 = vperm.slane %v386, 0
    %v398 = vunpack.c.l.b16 %v378
    %v399 = vunpack.c.l.b16 %v379
    %v400 = vunpack.c.l.b16 %v380
    %v401 = vunpack.c.l.b16 %v381
    %v402 = vunpack.c.l.b16 %v382
    %v403 = vunpack.c.l.b16 %v383
    %v404 = vunpack.c.l.b16 %v384
    %v405 = vunpack.c.l.b16 %v385
    %v406 = vpack.c.b16 %v399, %v398
    %v407 = vpack.c.b16 %v401, %v400
    %v408 = vpack.c.b16 %v403, %v402
    %v409 = vpack.c.b16 %v405, %v404
    %vm414 = vcmask 523264
    %v416 = vsel %vm414, %v377, 0
    %418 = vmatpush.bf16.msra.mxu0 0
    %419 = vmatpush.bf16.msra.mxu0 0
    %420 = vmatpush.bf16.msra.mxu0 0
    %421 = vmatpush.bf16.msra.mxu0 0
    %422 = vmatpush.bf16.msra.mxu0 %v409
    %423 = vmatpush.bf16.msra.mxu0 %v408
    %424 = vmatpush.bf16.msra.mxu0 %v407
    %425 = vmatpush.bf16.msra.mxu0 %v406
    %426 = vmatmul.bf16.gmra.mxu0 %v416
    %v427 = vpop.f32.mrf.mxu0
    %v428 = vadd.f32 %v388, %v427
    %v429 = vpop.f32.mrf.mxu0
    %430 = vdwg.mxu0
    %vm431 = vcmask 1041408
    %v432 = vsel %vm431, %v428, -inf
    %433 = vmax.xlane.f32.xlu0 %v432
    %v434 = vpop.xlane.xlu0 %433
    %v435 = vsub.f32 %v428, %v434
    %v436 = vmul.f32 %v435, 1.442695
    %v437 = vpow.pop %v436
    %v438 = vpack.c.bf16 %v437, %v437
    %v439 = vld [vmem:[%s9] sm:$0xf]
    %v440 = vld [vmem:[%s9 + $0x4] sm:$0xf]
    %v441 = vld [vmem:[%s9 + $0x8] sm:$0xf]
    %v442 = vld [vmem:[%s9 + $0xc] sm:$0xf]
    %v443 = vld [vmem:[%s9 + $0x10] sm:$0xf]
    %v444 = vld [vmem:[%s9 + $0x14] sm:$0xf]
    %v445 = vld [vmem:[%s9 + $0x18] sm:$0xf]
    %v446 = vld [vmem:[%s9 + $0x1c] sm:$0xf]
    %v447 = vld [vmem:[%s9 + $0x20] sm:$0xf]
    %v448 = vld [vmem:[%s9 + $0x24] sm:$0xf]
    %v449 = vld [vmem:[%s9 + $0x28] sm:$0xf]
    %v450 = vld [vmem:[%s9 + $0x2c] sm:$0xf]
    %v451 = vld [vmem:[%s9 + $0x30] sm:$0xf]
    %v452 = vld [vmem:[%s9 + $0x34] sm:$0xf]
    %v453 = vld [vmem:[%s9 + $0x38] sm:$0xf]
    %v454 = vld [vmem:[%s9 + $0x3c] sm:$0xf]
    %v471 = vunpack.c.l.b16 %v439
    %v472 = vunpack.c.l.b16 %v440
    %v473 = vunpack.c.l.b16 %v441
    %v474 = vunpack.c.l.b16 %v442
    %v475 = vunpack.c.l.b16 %v443
    %v476 = vunpack.c.l.b16 %v444
    %v477 = vunpack.c.l.b16 %v445
    %v478 = vunpack.c.l.b16 %v446
    %v479 = vunpack.c.l.b16 %v447
    %v480 = vunpack.c.l.b16 %v448
    %v481 = vunpack.c.l.b16 %v449
    %v482 = vunpack.c.l.b16 %v450
    %v483 = vunpack.c.l.b16 %v451
    %v484 = vunpack.c.l.b16 %v452
    %v485 = vunpack.c.l.b16 %v453
    %v486 = vunpack.c.l.b16 %v454
    %v487 = vpack.c.b16 %v472, %v471
    %v488 = vpack.c.b16 %v474, %v473
    %v489 = vpack.c.b16 %v476, %v475
    %v490 = vpack.c.b16 %v478, %v477
    %v491 = vpack.c.b16 %v480, %v479
    %v492 = vpack.c.b16 %v482, %v481
    %v493 = vpack.c.b16 %v484, %v483
    %v494 = vpack.c.b16 %v486, %v485
    %503 = vmatpush.bf16.msra.mxu0 %v494
    %504 = vmatpush.bf16.msra.mxu0 %v493
    %505 = vmatpush.bf16.msra.mxu0 %v492
    %506 = vmatpush.bf16.msra.mxu0 %v491
    %507 = vmatpush.bf16.msra.mxu0 %v490
    %508 = vmatpush.bf16.msra.mxu0 %v489
    %509 = vmatpush.bf16.msra.mxu0 %v488
    %510 = vmatpush.bf16.msra.mxu0 %v487
    %511 = vmatmul.bf16.gmra.mxu0 %v438
    %v512 = vpop.f32.mrf.mxu0
    %v513 = vadd.f32 0.0, %v512
    %v514 = vpop.f32.mrf.mxu0
    %515 = vdwg.mxu0
    %v516 = vmax.f32 %v513, 1e-30
    %v517 = vrcp.pop %v516
    %v518 = vmul.f32 %v516, %v517
    %v519 = vsub.f32 2.0, %v518
    %v520 = vmul.f32 %v517, %v519
    %v521 = vmul.f32 %v437, %v520
    %v522 = vpack.c.bf16 %v521, %v521
    %523 = vst [vmem:[#allocation7] sm:$0x1] %v522
    // Predicated region
    $region50: #{tpu_custom_call.1} parent=1 // pred_check
      _
    $region51: #{tpu_custom_call.1} parent=1 // pred_check_branch
      %525 = sbr.rel (0) target = $region53
    $region52: #{tpu_custom_call.1} parent=1 // pred_region
      %527 = vsyncadd [#allocation4], 0
      %s529 = sshll.u32 [#allocation7], 4
      %s530 = int_to_ptr.vmem [resolvable:$true] %s529
      %s531 = sshll.u32 %s10, 4
      %s532 = int_to_ptr.hbm [resolvable:$true] %s531
      %534 = dma.vmem_to_hbm [thread:$0]  %s530, 16, %s532, [#allocation4]
    $region53: #{tpu_custom_call.1} parent=1 // pred_fallthru
      _
    // Predicated region
    $region54: #{tpu_custom_call.1} parent=1 // pred_check
      _
    $region55: #{tpu_custom_call.1} parent=1 // pred_check_branch
      %536 = sbr.rel (0) target = $region57
    $region56: #{tpu_custom_call.1} parent=1 // pred_region
      %538 = dma.done [#allocation4], 16
    $region57: #{tpu_custom_call.1} parent=1 // pred_fallthru
      _
    %539 = vsyncpa [#allocation3], 1
    %540 = vsyncpa [#allocation6], 1
    %541 = vsyncpa [#allocation4], 1

</llo_original>
